<compile_context>
chip_gen: v7x
topology: tpu7x:2x2x1
jax: 0.10.0
libtpu: 0.0.40
codegen_flags: <defaults>
</compile_context>

<pallas_src>
import numpy as np
import jax
import jax.numpy as jnp
from jax.experimental import pallas as pl
from jax.experimental.pallas import tpu as pltpu


def _make_deepcrossing_kernel(num_units):
    """Kernel for `num_units` residual units + final projection + sigmoid.

    All activations are (D, TB) with the batch on the lane axis.
    """

    def kernel(*refs):
        # refs: zT, [w1T, b1, w2T, b2] * num_units, fc_w, fc_b, out
        zT_ref = refs[0]
        out_ref = refs[-1]
        params = refs[1:-1]

        z = zT_ref[...].astype(jnp.float32)          # (D, TB) residual stream, f32

        for k in range(num_units):
            w1t = params[4 * k][...]                 # (H, D)  bf16
            b1 = params[4 * k + 1][...]              # (H, 1)  f32
            w2t = params[4 * k + 2][...]             # (D, H)  bf16
            b2 = params[4 * k + 3][...]              # (D, 1)  f32
            h = jnp.dot(w1t, z.astype(jnp.bfloat16),
                        preferred_element_type=jnp.float32) + b1
            h = jnp.maximum(h, 0.0)                  # (H, TB)
            r = jnp.dot(w2t, h.astype(jnp.bfloat16),
                        preferred_element_type=jnp.float32) + b2
            z = jnp.maximum(r + z, 0.0)              # (D, TB)

        fc_w = params[4 * num_units][...]            # (D, 1) f32
        fc_b = params[4 * num_units + 1][...]        # (1, 1) f32
        # Final D->1 projection on the VPU (mul) + XLU (sublane reduce): gives a
        # lane-dense (1, TB) row directly, no N=1 MXU matmul, no transpose.
        logit = jnp.sum(z * fc_w, axis=0, keepdims=True) + fc_b   # (1, TB)
        out_ref[...] = jax.nn.sigmoid(logit)

    return kernel


def _padded_vmem_bytes(shape, dtype):
    """Bytes of one VMEM buffer for `shape`, accounting for (8,128) tiling."""
    shape = tuple(int(s) for s in shape)
    if len(shape) == 1:
        shape = (1,) + shape
    lead = int(np.prod(shape[:-2])) if len(shape) > 2 else 1
    sub = -(-shape[-2] // 8) * 8
    lane = -(-shape[-1] // 128) * 128
    return lead * sub * lane * jnp.dtype(dtype).itemsize


def deepcrossing_forward(x_tokens, params, *, block_b=512):
    """Forward pass matching DeepCrossingModel.forward (eval mode).

    x_tokens: (batch, num_fields) int32 per-field indices.
    Returns: (batch,) float32 == sigmoid(logit).squeeze(1).
    """
    emb_table = params["embedding"]      # (sum(field_dims), embed_dim)
    offsets = params["offsets"]          # (num_fields,) int32

    # FeaturesEmbedding: x + offsets, then lookup -> (B, F, E), flatten -> (B, D).
    # TODO(synk): fuse this gather into the kernel (scalar-prefetched token ids
    # + in-kernel take / manual DMA) to avoid materializing z in HBM twice.
    idx = x_tokens + offsets[None, :]
    embed_x = emb_table[idx]
    B, F, E = embed_x.shape
    D = F * E
    z = embed_x.reshape(B, D)

    # Batch goes on the lane axis inside the kernel: pad it to a lane-friendly
    # size and pick the batch tile. Small batches -> one big block (grid=(1,));
    # large batches -> 512-wide lane blocks (>=2 parallel steps for v7x's 2 TCs).
    block_b = int(128 * pl.cdiv(int(block_b), 128))
    B_lane = int(128 * pl.cdiv(B, 128))
    if B_lane <= block_b:
        block_b_eff = B_lane
        B_pad = B_lane
    else:
        block_b_eff = block_b
        B_pad = int(block_b * pl.cdiv(B_lane, block_b))
    if B_pad > B:
        z = jnp.pad(z, ((0, B_pad - B), (0, 0)))
    zT = z.T.astype(jnp.bfloat16)                    # (D, B_pad), lane-dense batch

    # Weights pre-transposed to the (out, in) layout; matmul inputs in bf16,
    # biases kept f32 (added after f32 accumulation).
    flat_params = []
    for (w1, b1, w2, b2) in params["residual_units"]:
        flat_params += [
            w1.T.astype(jnp.bfloat16),                 # (H, D)
            b1.reshape(-1, 1).astype(jnp.float32),     # (H, 1)
            w2.T.astype(jnp.bfloat16),                 # (D, H)
            b2.reshape(-1, 1).astype(jnp.float32),     # (D, 1)
        ]
    flat_params += [params["fc_w"].astype(jnp.float32),          # (D, 1)
                    params["fc_b"].reshape(1, 1).astype(jnp.float32)]

    num_units = len(params["residual_units"])
    kernel = _make_deepcrossing_kernel(num_units)
    grid = (B_pad // block_b_eff,)

    # Explicit VMEM budget (counts double buffers conservatively) + margin,
    # so the config is well-defined on v7x's 64 MiB VMEM as well.
    vmem_needed = 2 * _padded_vmem_bytes((D, block_b_eff), jnp.bfloat16)   # zT
    vmem_needed += 2 * _padded_vmem_bytes((1, block_b_eff), jnp.float32)   # out
    for p in flat_params:
        vmem_needed += 2 * _padded_vmem_bytes(p.shape, p.dtype)
    vmem_limit = min(int(2 * vmem_needed) + (8 << 20), 100 << 20)

    def build(weight_pipeline_mode):
        in_specs = [pl.BlockSpec((D, block_b_eff), lambda i: (0, i))]
        for p in flat_params:
            if weight_pipeline_mode is None:
                in_specs.append(pl.BlockSpec(p.shape, lambda i: (0, 0)))
            else:
                # Grid-invariant weights: single VMEM buffer halves their
                # footprint (matters for production D/H on v7x's 64 MiB VMEM).
                in_specs.append(pl.BlockSpec(p.shape, lambda i: (0, 0),
                                             pipeline_mode=weight_pipeline_mode))
        return pl.pallas_call(
            kernel,
            out_shape=jax.ShapeDtypeStruct((1, B_pad), jnp.float32),
            grid_spec=pltpu.PrefetchScalarGridSpec(
                num_scalar_prefetch=0,
                grid=grid,
                in_specs=in_specs,
                out_specs=pl.BlockSpec((1, block_b_eff), lambda i: (0, i)),
            ),
            compiler_params=pltpu.CompilerParams(
                dimension_semantics=("parallel",),
                vmem_limit_bytes=vmem_limit),
        )

    try:
        out = build(pl.Buffered(1))(zT, *flat_params)
    except Exception:
        # Fallback for jax versions without pipeline_mode / single buffering.
        out = build(None)(zT, *flat_params)

    return out[0, :B]            # torch.sigmoid(x.squeeze(1))


def _reference_forward(x_tokens, params):
    """Pure-JAX f32 reference for correctness checking."""
    idx = x_tokens + params["offsets"][None, :]
    z = params["embedding"][idx].reshape(x_tokens.shape[0], -1)
    for (w1, b1, w2, b2) in params["residual_units"]:
        h = jnp.maximum(z @ w1 + b1, 0.0)
        z = jnp.maximum(h @ w2 + b2 + z, 0.0)
    logit = z @ params["fc_w"] + params["fc_b"]
    return jax.nn.sigmoid(logit)[:, 0]


def init_params(key, field_dims, embed_dim, mlp_dims):
    """Deterministic synthetic parameters matching the module's shapes."""
    D = len(field_dims) * embed_dim
    total = int(sum(field_dims))
    n_keys = 1 + 4 * len(mlp_dims) + 2
    keys = iter(jax.random.split(key, n_keys))

    emb_table = jax.random.normal(next(keys), (total, embed_dim), jnp.float32) * 0.1
    offsets = jnp.asarray(
        np.concatenate([[0], np.cumsum(field_dims)[:-1]]), jnp.int32)

    residual_units = []
    for h in mlp_dims:
        w1 = jax.random.normal(next(keys), (D, h), jnp.float32) / np.sqrt(D)
        b1 = jax.random.normal(next(keys), (h,), jnp.float32) * 0.01
        w2 = jax.random.normal(next(keys), (h, D), jnp.float32) / np.sqrt(h)
        b2 = jax.random.normal(next(keys), (D,), jnp.float32) * 0.01
        residual_units.append((w1, b1, w2, b2))

    fc_w = jax.random.normal(next(keys), (D, 1), jnp.float32) / np.sqrt(D)
    fc_b = jax.random.normal(next(keys), (1,), jnp.float32) * 0.01

    return {
        "embedding": emb_table,
        "offsets": offsets,
        "residual_units": residual_units,
        "fc_w": fc_w,
        "fc_b": fc_b,
    }


if __name__ == "__main__":
    # Small config: 4 fields, embed_dim=8 -> embed_output_dim=32, two residual
    # units with hidden 16, dropout=0.2 (inference no-op), batch=16.
    field_dims = (4, 6, 5, 3)
    embed_dim = 8
    mlp_dims = (16, 16)
    batch = 16

    key = jax.random.PRNGKey(0)
    k_params, k_x = jax.random.split(key)

    params = init_params(k_params, field_dims, embed_dim, mlp_dims)

    # Token input: per-field index in [0, field_dims[i]).
    cols = []
    for i, fd in enumerate(field_dims):
        cols.append(
            jax.random.randint(jax.random.fold_in(k_x, i), (batch,), 0, fd))
    x_tokens = jnp.stack(cols, axis=1).astype(jnp.int32)   # (batch, num_fields)

    y = deepcrossing_forward(x_tokens, params)
    y = jax.block_until_ready(y)

    y_ref = jax.block_until_ready(_reference_forward(x_tokens, params))
    assert y.shape == (batch,)
    # bf16 matmul inputs (f32 accumulation) -> loosened tolerance vs f32 ref.
    np.testing.assert_allclose(np.asarray(y), np.asarray(y_ref),
                               rtol=1e-2, atol=1e-2)
    print("KERNEL_OK")
</pallas_src>

<mosaic_0001>
module attributes {stable_mosaic.version = 11 : i64} {
  func.func @kernel(%arg0: i32, %arg1: memref<32x128xbf16, #tpu.memory_space<vmem>>, %arg2: memref<16x32xbf16, #tpu.memory_space<vmem>>, %arg3: memref<16x1xf32, #tpu.memory_space<vmem>>, %arg4: memref<32x16xbf16, #tpu.memory_space<vmem>>, %arg5: memref<32x1xf32, #tpu.memory_space<vmem>>, %arg6: memref<16x32xbf16, #tpu.memory_space<vmem>>, %arg7: memref<16x1xf32, #tpu.memory_space<vmem>>, %arg8: memref<32x16xbf16, #tpu.memory_space<vmem>>, %arg9: memref<32x1xf32, #tpu.memory_space<vmem>>, %arg10: memref<32x1xf32, #tpu.memory_space<vmem>>, %arg11: memref<1x1xf32, #tpu.memory_space<vmem>>, %arg12: memref<1x128xf32, #tpu.memory_space<vmem>>) attributes {dimension_semantics = [#tpu.dimension_semantics<parallel>], iteration_bounds = array<i64: 1>, scalar_prefetch = 0 : i64, scratch_operands = 0 : i64, tpu.core_type = #tpu.core_type<tc>, window_params = [{transform_indices = @transform_0, window_bounds = array<i64: 32, 128>}, {pipeline_mode = #tpu.pipeline_mode<synchronous>, transform_indices = @transform_1, window_bounds = array<i64: 16, 32>}, {pipeline_mode = #tpu.pipeline_mode<synchronous>, transform_indices = @transform_2, window_bounds = array<i64: 16, 1>}, {pipeline_mode = #tpu.pipeline_mode<synchronous>, transform_indices = @transform_3, window_bounds = array<i64: 32, 16>}, {pipeline_mode = #tpu.pipeline_mode<synchronous>, transform_indices = @transform_4, window_bounds = array<i64: 32, 1>}, {pipeline_mode = #tpu.pipeline_mode<synchronous>, transform_indices = @transform_5, window_bounds = array<i64: 16, 32>}, {pipeline_mode = #tpu.pipeline_mode<synchronous>, transform_indices = @transform_6, window_bounds = array<i64: 16, 1>}, {pipeline_mode = #tpu.pipeline_mode<synchronous>, transform_indices = @transform_7, window_bounds = array<i64: 32, 16>}, {pipeline_mode = #tpu.pipeline_mode<synchronous>, transform_indices = @transform_8, window_bounds = array<i64: 32, 1>}, {pipeline_mode = #tpu.pipeline_mode<synchronous>, transform_indices = @transform_9, window_bounds = array<i64: 32, 1>}, {pipeline_mode = #tpu.pipeline_mode<synchronous>, transform_indices = @transform_10, window_bounds = array<i64: 1, 1>}, {transform_indices = @transform_11, window_bounds = array<i64: 1, 128>}]} {
    %c0 = arith.constant 0 : index
    %c0_0 = arith.constant 0 : index
    %0 = vector.load %arg1[%c0, %c0_0] : memref<32x128xbf16, #tpu.memory_space<vmem>>, vector<32x128xbf16>
    %1 = arith.extf %0 : vector<32x128xbf16> to vector<32x128xf32>
    %c0_1 = arith.constant 0 : index
    %c0_2 = arith.constant 0 : index
    %2 = vector.load %arg2[%c0_1, %c0_2] : memref<16x32xbf16, #tpu.memory_space<vmem>>, vector<16x32xbf16>
    %c0_3 = arith.constant 0 : index
    %c0_4 = arith.constant 0 : index
    %3 = vector.load %arg3[%c0_3, %c0_4] : memref<16x1xf32, #tpu.memory_space<vmem>>, vector<16x1xf32>
    %c0_5 = arith.constant 0 : index
    %c0_6 = arith.constant 0 : index
    %4 = vector.load %arg4[%c0_5, %c0_6] : memref<32x16xbf16, #tpu.memory_space<vmem>>, vector<32x16xbf16>
    %c0_7 = arith.constant 0 : index
    %c0_8 = arith.constant 0 : index
    %5 = vector.load %arg5[%c0_7, %c0_8] : memref<32x1xf32, #tpu.memory_space<vmem>>, vector<32x1xf32>
    %6 = arith.truncf %1 : vector<32x128xf32> to vector<32x128xbf16>
    %cst = arith.constant dense<0.000000e+00> : vector<16x128xf32>
    %7 = tpu.matmul %2, %6, %cst {dimension_numbers = #tpu.dot_dimension_numbers<[1], [0], [0], [1], [0, 0, 1, 1], [], []>} : vector<16x32xbf16>, vector<32x128xbf16>, vector<16x128xf32> -> vector<16x128xf32>
    %8 = vector.broadcast %3 : vector<16x1xf32> to vector<16x128xf32>
    %9 = arith.addf %7, %8 : vector<16x128xf32>
    %cst_9 = arith.constant 0.000000e+00 : f32
    %10 = vector.broadcast %cst_9 : f32 to vector<16x128xf32>
    %11 = arith.maximumf %9, %10 : vector<16x128xf32>
    %12 = arith.truncf %11 : vector<16x128xf32> to vector<16x128xbf16>
    %cst_10 = arith.constant dense<0.000000e+00> : vector<32x128xf32>
    %13 = tpu.matmul %4, %12, %cst_10 {dimension_numbers = #tpu.dot_dimension_numbers<[1], [0], [0], [1], [0, 0, 1, 1], [], []>} : vector<32x16xbf16>, vector<16x128xbf16>, vector<32x128xf32> -> vector<32x128xf32>
    %14 = vector.broadcast %5 : vector<32x1xf32> to vector<32x128xf32>
    %15 = arith.addf %13, %14 : vector<32x128xf32>
    %16 = arith.addf %15, %1 : vector<32x128xf32>
    %cst_11 = arith.constant 0.000000e+00 : f32
    %17 = vector.broadcast %cst_11 : f32 to vector<32x128xf32>
    %18 = arith.maximumf %16, %17 : vector<32x128xf32>
    %c0_12 = arith.constant 0 : index
    %c0_13 = arith.constant 0 : index
    %19 = vector.load %arg6[%c0_12, %c0_13] : memref<16x32xbf16, #tpu.memory_space<vmem>>, vector<16x32xbf16>
    %c0_14 = arith.constant 0 : index
    %c0_15 = arith.constant 0 : index
    %20 = vector.load %arg7[%c0_14, %c0_15] : memref<16x1xf32, #tpu.memory_space<vmem>>, vector<16x1xf32>
    %c0_16 = arith.constant 0 : index
    %c0_17 = arith.constant 0 : index
    %21 = vector.load %arg8[%c0_16, %c0_17] : memref<32x16xbf16, #tpu.memory_space<vmem>>, vector<32x16xbf16>
    %c0_18 = arith.constant 0 : index
    %c0_19 = arith.constant 0 : index
    %22 = vector.load %arg9[%c0_18, %c0_19] : memref<32x1xf32, #tpu.memory_space<vmem>>, vector<32x1xf32>
    %23 = arith.truncf %18 : vector<32x128xf32> to vector<32x128xbf16>
    %cst_20 = arith.constant dense<0.000000e+00> : vector<16x128xf32>
    %24 = tpu.matmul %19, %23, %cst_20 {dimension_numbers = #tpu.dot_dimension_numbers<[1], [0], [0], [1], [0, 0, 1, 1], [], []>} : vector<16x32xbf16>, vector<32x128xbf16>, vector<16x128xf32> -> vector<16x128xf32>
    %25 = vector.broadcast %20 : vector<16x1xf32> to vector<16x128xf32>
    %26 = arith.addf %24, %25 : vector<16x128xf32>
    %cst_21 = arith.constant 0.000000e+00 : f32
    %27 = vector.broadcast %cst_21 : f32 to vector<16x128xf32>
    %28 = arith.maximumf %26, %27 : vector<16x128xf32>
    %29 = arith.truncf %28 : vector<16x128xf32> to vector<16x128xbf16>
    %cst_22 = arith.constant dense<0.000000e+00> : vector<32x128xf32>
    %30 = tpu.matmul %21, %29, %cst_22 {dimension_numbers = #tpu.dot_dimension_numbers<[1], [0], [0], [1], [0, 0, 1, 1], [], []>} : vector<32x16xbf16>, vector<16x128xbf16>, vector<32x128xf32> -> vector<32x128xf32>
    %31 = vector.broadcast %22 : vector<32x1xf32> to vector<32x128xf32>
    %32 = arith.addf %30, %31 : vector<32x128xf32>
    %33 = arith.addf %32, %18 : vector<32x128xf32>
    %cst_23 = arith.constant 0.000000e+00 : f32
    %34 = vector.broadcast %cst_23 : f32 to vector<32x128xf32>
    %35 = arith.maximumf %33, %34 : vector<32x128xf32>
    %c0_24 = arith.constant 0 : index
    %c0_25 = arith.constant 0 : index
    %36 = vector.load %arg10[%c0_24, %c0_25] : memref<32x1xf32, #tpu.memory_space<vmem>>, vector<32x1xf32>
    %c0_26 = arith.constant 0 : index
    %c0_27 = arith.constant 0 : index
    %37 = vector.load %arg11[%c0_26, %c0_27] : memref<1x1xf32, #tpu.memory_space<vmem>>, vector<1x1xf32>
    %38 = vector.broadcast %36 : vector<32x1xf32> to vector<32x128xf32>
    %39 = arith.mulf %35, %38 : vector<32x128xf32>
    %cst_28 = arith.constant dense<0.000000e+00> : vector<128xf32>
    %40 = vector.multi_reduction <add>, %39, %cst_28 [0] : vector<32x128xf32> to vector<128xf32>
    %41 = vector.shape_cast %40 : vector<128xf32> to vector<1x128xf32>
    %42 = vector.broadcast %37 : vector<1x1xf32> to vector<1x128xf32>
    %43 = arith.addf %41, %42 : vector<1x128xf32>
    %44 = arith.negf %43 : vector<1x128xf32>
    %45 = math.exp %44 : vector<1x128xf32>
    %cst_29 = arith.constant 1.000000e+00 : f32
    %46 = vector.broadcast %cst_29 : f32 to vector<1x128xf32>
    %47 = arith.addf %46, %45 : vector<1x128xf32>
    %48 = arith.divf %46, %47 : vector<1x128xf32>
    %c0_30 = arith.constant 0 : index
    %c0_31 = arith.constant 0 : index
    %49 = vector.load %arg12[%c0_30, %c0_31] : memref<1x128xf32, #tpu.memory_space<vmem>>, vector<1x128xf32>
    tpu.vector_store %arg12[%c0_30, %c0_31], %48 {strides = array<i32>} : memref<1x128xf32, #tpu.memory_space<vmem>>, vector<1x128xf32>,
    return
  }
  func.func @transform_0(%arg0: i32) -> (i32, i32) {
    %c0_i32 = arith.constant 0 : i32
    %c0_i32_0 = arith.constant 0 : i32
    return %c0_i32, %arg0 : i32, i32
  }
  func.func @transform_1(%arg0: i32) -> (i32, i32) {
    %c0_i32 = arith.constant 0 : i32
    %c0_i32_0 = arith.constant 0 : i32
    %c0_i32_1 = arith.constant 0 : i32
    return %c0_i32, %c0_i32_0 : i32, i32
  }
  func.func @transform_2(%arg0: i32) -> (i32, i32) {
    %c0_i32 = arith.constant 0 : i32
    %c0_i32_0 = arith.constant 0 : i32
    %c0_i32_1 = arith.constant 0 : i32
    return %c0_i32, %c0_i32_0 : i32, i32
  }
  func.func @transform_3(%arg0: i32) -> (i32, i32) {
    %c0_i32 = arith.constant 0 : i32
    %c0_i32_0 = arith.constant 0 : i32
    %c0_i32_1 = arith.constant 0 : i32
    return %c0_i32, %c0_i32_0 : i32, i32
  }
  func.func @transform_4(%arg0: i32) -> (i32, i32) {
    %c0_i32 = arith.constant 0 : i32
    %c0_i32_0 = arith.constant 0 : i32
    %c0_i32_1 = arith.constant 0 : i32
    return %c0_i32, %c0_i32_0 : i32, i32
  }
  func.func @transform_5(%arg0: i32) -> (i32, i32) {
    %c0_i32 = arith.constant 0 : i32
    %c0_i32_0 = arith.constant 0 : i32
    %c0_i32_1 = arith.constant 0 : i32
    return %c0_i32, %c0_i32_0 : i32, i32
  }
  func.func @transform_6(%arg0: i32) -> (i32, i32) {
    %c0_i32 = arith.constant 0 : i32
    %c0_i32_0 = arith.constant 0 : i32
    %c0_i32_1 = arith.constant 0 : i32
    return %c0_i32, %c0_i32_0 : i32, i32
  }
  func.func @transform_7(%arg0: i32) -> (i32, i32) {
    %c0_i32 = arith.constant 0 : i32
    %c0_i32_0 = arith.constant 0 : i32
    %c0_i32_1 = arith.constant 0 : i32
    return %c0_i32, %c0_i32_0 : i32, i32
  }
  func.func @transform_8(%arg0: i32) -> (i32, i32) {
    %c0_i32 = arith.constant 0 : i32
    %c0_i32_0 = arith.constant 0 : i32
    %c0_i32_1 = arith.constant 0 : i32
    return %c0_i32, %c0_i32_0 : i32, i32
  }
  func.func @transform_9(%arg0: i32) -> (i32, i32) {
    %c0_i32 = arith.constant 0 : i32
    %c0_i32_0 = arith.constant 0 : i32
    %c0_i32_1 = arith.constant 0 : i32
    return %c0_i32, %c0_i32_0 : i32, i32
  }
  func.func @transform_10(%arg0: i32) -> (i32, i32) {
    %c0_i32 = arith.constant 0 : i32
    %c0_i32_0 = arith.constant 0 : i32
    %c0_i32_1 = arith.constant 0 : i32
    return %c0_i32, %c0_i32_0 : i32, i32
  }
  func.func @transform_11(%arg0: i32) -> (i32, i32) {
    %c0_i32 = arith.constant 0 : i32
    %c0_i32_0 = arith.constant 0 : i32
    return %c0_i32, %arg0 : i32, i32
  }
}

module attributes {stable_mosaic.version = 11 : i64} {
  func.func @kernel(%arg0: i32, %arg1: memref<32x128xbf16, #tpu.memory_space<vmem>>, %arg2: memref<16x32xbf16, #tpu.memory_space<vmem>>, %arg3: memref<16x1xf32, #tpu.memory_space<vmem>>, %arg4: memref<32x16xbf16, #tpu.memory_space<vmem>>, %arg5: memref<32x1xf32, #tpu.memory_space<vmem>>, %arg6: memref<16x32xbf16, #tpu.memory_space<vmem>>, %arg7: memref<16x1xf32, #tpu.memory_space<vmem>>, %arg8: memref<32x16xbf16, #tpu.memory_space<vmem>>, %arg9: memref<32x1xf32, #tpu.memory_space<vmem>>, %arg10: memref<32x1xf32, #tpu.memory_space<vmem>>, %arg11: memref<1x1xf32, #tpu.memory_space<vmem>>, %arg12: memref<1x128xf32, #tpu.memory_space<vmem>>) attributes {dimension_semantics = [#tpu.dimension_semantics<parallel>], iteration_bounds = array<i64: 1>, scalar_prefetch = 0 : i64, scratch_operands = 0 : i64, tpu.core_type = #tpu.core_type<tc>, window_params = [{transform_indices = @transform_0, window_bounds = array<i64: 32, 128>}, {pipeline_mode = #tpu.pipeline_mode<synchronous>, transform_indices = @transform_1, window_bounds = array<i64: 16, 32>}, {pipeline_mode = #tpu.pipeline_mode<synchronous>, transform_indices = @transform_2, window_bounds = array<i64: 16, 1>}, {pipeline_mode = #tpu.pipeline_mode<synchronous>, transform_indices = @transform_3, window_bounds = array<i64: 32, 16>}, {pipeline_mode = #tpu.pipeline_mode<synchronous>, transform_indices = @transform_4, window_bounds = array<i64: 32, 1>}, {pipeline_mode = #tpu.pipeline_mode<synchronous>, transform_indices = @transform_5, window_bounds = array<i64: 16, 32>}, {pipeline_mode = #tpu.pipeline_mode<synchronous>, transform_indices = @transform_6, window_bounds = array<i64: 16, 1>}, {pipeline_mode = #tpu.pipeline_mode<synchronous>, transform_indices = @transform_7, window_bounds = array<i64: 32, 16>}, {pipeline_mode = #tpu.pipeline_mode<synchronous>, transform_indices = @transform_8, window_bounds = array<i64: 32, 1>}, {pipeline_mode = #tpu.pipeline_mode<synchronous>, transform_indices = @transform_9, window_bounds = array<i64: 32, 1>}, {pipeline_mode = #tpu.pipeline_mode<synchronous>, transform_indices = @transform_10, window_bounds = array<i64: 1, 1>}, {transform_indices = @transform_11, window_bounds = array<i64: 1, 128>}]} {
    %c0 = arith.constant 0 : index
    %c0_0 = arith.constant 0 : index
    %0 = vector.load %arg1[%c0, %c0_0] : memref<32x128xbf16, #tpu.memory_space<vmem>>, vector<32x128xbf16>
    %1 = arith.extf %0 : vector<32x128xbf16> to vector<32x128xf32>
    %c0_1 = arith.constant 0 : index
    %c0_2 = arith.constant 0 : index
    %2 = vector.load %arg2[%c0_1, %c0_2] : memref<16x32xbf16, #tpu.memory_space<vmem>>, vector<16x32xbf16>
    %c0_3 = arith.constant 0 : index
    %c0_4 = arith.constant 0 : index
    %3 = vector.load %arg3[%c0_3, %c0_4] : memref<16x1xf32, #tpu.memory_space<vmem>>, vector<16x1xf32>
    %c0_5 = arith.constant 0 : index
    %c0_6 = arith.constant 0 : index
    %4 = vector.load %arg4[%c0_5, %c0_6] : memref<32x16xbf16, #tpu.memory_space<vmem>>, vector<32x16xbf16>
    %c0_7 = arith.constant 0 : index
    %c0_8 = arith.constant 0 : index
    %5 = vector.load %arg5[%c0_7, %c0_8] : memref<32x1xf32, #tpu.memory_space<vmem>>, vector<32x1xf32>
    %6 = arith.truncf %1 : vector<32x128xf32> to vector<32x128xbf16>
    %cst = arith.constant dense<0.000000e+00> : vector<16x128xf32>
    %7 = tpu.matmul %2, %6, %cst {dimension_numbers = #tpu.dot_dimension_numbers<[1], [0], [0], [1], [0, 0, 1, 1], [], []>} : vector<16x32xbf16>, vector<32x128xbf16>, vector<16x128xf32> -> vector<16x128xf32>
    %8 = vector.broadcast %3 : vector<16x1xf32> to vector<16x128xf32>
    %9 = arith.addf %7, %8 : vector<16x128xf32>
    %cst_9 = arith.constant 0.000000e+00 : f32
    %10 = vector.broadcast %cst_9 : f32 to vector<16x128xf32>
    %11 = arith.maximumf %9, %10 : vector<16x128xf32>
    %12 = arith.truncf %11 : vector<16x128xf32> to vector<16x128xbf16>
    %cst_10 = arith.constant dense<0.000000e+00> : vector<32x128xf32>
    %13 = tpu.matmul %4, %12, %cst_10 {dimension_numbers = #tpu.dot_dimension_numbers<[1], [0], [0], [1], [0, 0, 1, 1], [], []>} : vector<32x16xbf16>, vector<16x128xbf16>, vector<32x128xf32> -> vector<32x128xf32>
    %14 = vector.broadcast %5 : vector<32x1xf32> to vector<32x128xf32>
    %15 = arith.addf %13, %14 : vector<32x128xf32>
    %16 = arith.addf %15, %1 : vector<32x128xf32>
    %cst_11 = arith.constant 0.000000e+00 : f32
    %17 = vector.broadcast %cst_11 : f32 to vector<32x128xf32>
    %18 = arith.maximumf %16, %17 : vector<32x128xf32>
    %c0_12 = arith.constant 0 : index
    %c0_13 = arith.constant 0 : index
    %19 = vector.load %arg6[%c0_12, %c0_13] : memref<16x32xbf16, #tpu.memory_space<vmem>>, vector<16x32xbf16>
    %c0_14 = arith.constant 0 : index
    %c0_15 = arith.constant 0 : index
    %20 = vector.load %arg7[%c0_14, %c0_15] : memref<16x1xf32, #tpu.memory_space<vmem>>, vector<16x1xf32>
    %c0_16 = arith.constant 0 : index
    %c0_17 = arith.constant 0 : index
    %21 = vector.load %arg8[%c0_16, %c0_17] : memref<32x16xbf16, #tpu.memory_space<vmem>>, vector<32x16xbf16>
    %c0_18 = arith.constant 0 : index
    %c0_19 = arith.constant 0 : index
    %22 = vector.load %arg9[%c0_18, %c0_19] : memref<32x1xf32, #tpu.memory_space<vmem>>, vector<32x1xf32>
    %23 = arith.truncf %18 : vector<32x128xf32> to vector<32x128xbf16>
    %cst_20 = arith.constant dense<0.000000e+00> : vector<16x128xf32>
    %24 = tpu.matmul %19, %23, %cst_20 {dimension_numbers = #tpu.dot_dimension_numbers<[1], [0], [0], [1], [0, 0, 1, 1], [], []>} : vector<16x32xbf16>, vector<32x128xbf16>, vector<16x128xf32> -> vector<16x128xf32>
    %25 = vector.broadcast %20 : vector<16x1xf32> to vector<16x128xf32>
    %26 = arith.addf %24, %25 : vector<16x128xf32>
    %cst_21 = arith.constant 0.000000e+00 : f32
    %27 = vector.broadcast %cst_21 : f32 to vector<16x128xf32>
    %28 = arith.maximumf %26, %27 : vector<16x128xf32>
    %29 = arith.truncf %28 : vector<16x128xf32> to vector<16x128xbf16>
    %cst_22 = arith.constant dense<0.000000e+00> : vector<32x128xf32>
    %30 = tpu.matmul %21, %29, %cst_22 {dimension_numbers = #tpu.dot_dimension_numbers<[1], [0], [0], [1], [0, 0, 1, 1], [], []>} : vector<32x16xbf16>, vector<16x128xbf16>, vector<32x128xf32> -> vector<32x128xf32>
    %31 = vector.broadcast %22 : vector<32x1xf32> to vector<32x128xf32>
    %32 = arith.addf %30, %31 : vector<32x128xf32>
    %33 = arith.addf %32, %18 : vector<32x128xf32>
    %cst_23 = arith.constant 0.000000e+00 : f32
    %34 = vector.broadcast %cst_23 : f32 to vector<32x128xf32>
    %35 = arith.maximumf %33, %34 : vector<32x128xf32>
    %c0_24 = arith.constant 0 : index
    %c0_25 = arith.constant 0 : index
    %36 = vector.load %arg10[%c0_24, %c0_25] : memref<32x1xf32, #tpu.memory_space<vmem>>, vector<32x1xf32>
    %c0_26 = arith.constant 0 : index
    %c0_27 = arith.constant 0 : index
    %37 = vector.load %arg11[%c0_26, %c0_27] : memref<1x1xf32, #tpu.memory_space<vmem>>, vector<1x1xf32>
    %38 = vector.broadcast %36 : vector<32x1xf32> to vector<32x128xf32>
    %39 = arith.mulf %35, %38 : vector<32x128xf32>
    %cst_28 = arith.constant dense<0.000000e+00> : vector<128xf32>
    %40 = vector.multi_reduction <add>, %39, %cst_28 [0] : vector<32x128xf32> to vector<128xf32>
    %41 = vector.shape_cast %40 : vector<128xf32> to vector<1x128xf32>
    %42 = vector.broadcast %37 : vector<1x1xf32> to vector<1x128xf32>
    %43 = arith.addf %41, %42 : vector<1x128xf32>
    %44 = arith.negf %43 : vector<1x128xf32>
    %45 = math.exp %44 : vector<1x128xf32>
    %cst_29 = arith.constant 1.000000e+00 : f32
    %46 = vector.broadcast %cst_29 : f32 to vector<1x128xf32>
    %47 = arith.addf %46, %45 : vector<1x128xf32>
    %48 = arith.divf %46, %47 : vector<1x128xf32>
    %c0_30 = arith.constant 0 : index
    %c0_31 = arith.constant 0 : index
    %49 = vector.load %arg12[%c0_30, %c0_31] : memref<1x128xf32, #tpu.memory_space<vmem>>, vector<1x128xf32>
    tpu.vector_store %arg12[%c0_30, %c0_31], %48 {strides = array<i32>} : memref<1x128xf32, #tpu.memory_space<vmem>>, vector<1x128xf32>,
    return
  }
  func.func @transform_0(%arg0: i32) -> (i32, i32) {
    %c0_i32 = arith.constant 0 : i32
    %c0_i32_0 = arith.constant 0 : i32
    return %c0_i32, %arg0 : i32, i32
  }
  func.func @transform_1(%arg0: i32) -> (i32, i32) {
    %c0_i32 = arith.constant 0 : i32
    %c0_i32_0 = arith.constant 0 : i32
    %c0_i32_1 = arith.constant 0 : i32
    return %c0_i32, %c0_i32_0 : i32, i32
  }
  func.func @transform_2(%arg0: i32) -> (i32, i32) {
    %c0_i32 = arith.constant 0 : i32
    %c0_i32_0 = arith.constant 0 : i32
    %c0_i32_1 = arith.constant 0 : i32
    return %c0_i32, %c0_i32_0 : i32, i32
  }
  func.func @transform_3(%arg0: i32) -> (i32, i32) {
    %c0_i32 = arith.constant 0 : i32
    %c0_i32_0 = arith.constant 0 : i32
    %c0_i32_1 = arith.constant 0 : i32
    return %c0_i32, %c0_i32_0 : i32, i32
  }
  func.func @transform_4(%arg0: i32) -> (i32, i32) {
    %c0_i32 = arith.constant 0 : i32
    %c0_i32_0 = arith.constant 0 : i32
    %c0_i32_1 = arith.constant 0 : i32
    return %c0_i32, %c0_i32_0 : i32, i32
  }
  func.func @transform_5(%arg0: i32) -> (i32, i32) {
    %c0_i32 = arith.constant 0 : i32
    %c0_i32_0 = arith.constant 0 : i32
    %c0_i32_1 = arith.constant 0 : i32
    return %c0_i32, %c0_i32_0 : i32, i32
  }
  func.func @transform_6(%arg0: i32) -> (i32, i32) {
    %c0_i32 = arith.constant 0 : i32
    %c0_i32_0 = arith.constant 0 : i32
    %c0_i32_1 = arith.constant 0 : i32
    return %c0_i32, %c0_i32_0 : i32, i32
  }
  func.func @transform_7(%arg0: i32) -> (i32, i32) {
    %c0_i32 = arith.constant 0 : i32
    %c0_i32_0 = arith.constant 0 : i32
    %c0_i32_1 = arith.constant 0 : i32
    return %c0_i32, %c0_i32_0 : i32, i32
  }
  func.func @transform_8(%arg0: i32) -> (i32, i32) {
    %c0_i32 = arith.constant 0 : i32
    %c0_i32_0 = arith.constant 0 : i32
    %c0_i32_1 = arith.constant 0 : i32
    return %c0_i32, %c0_i32_0 : i32, i32
  }
  func.func @transform_9(%arg0: i32) -> (i32, i32) {
    %c0_i32 = arith.constant 0 : i32
    %c0_i32_0 = arith.constant 0 : i32
    %c0_i32_1 = arith.constant 0 : i32
    return %c0_i32, %c0_i32_0 : i32, i32
  }
  func.func @transform_10(%arg0: i32) -> (i32, i32) {
    %c0_i32 = arith.constant 0 : i32
    %c0_i32_0 = arith.constant 0 : i32
    %c0_i32_1 = arith.constant 0 : i32
    return %c0_i32, %c0_i32_0 : i32, i32
  }
  func.func @transform_11(%arg0: i32) -> (i32, i32) {
    %c0_i32 = arith.constant 0 : i32
    %c0_i32_0 = arith.constant 0 : i32
    return %c0_i32, %arg0 : i32, i32
  }
}

</mosaic_0001>

<llo_original>
// kernel: tpu_custom_call.1
$region0: #{tpu_custom_call.1}
  #allocation0 [shape = 'u32[]', space=smem, size = 0x4, offset = 0x4, fixed_abs, tag = 'smem constant byte address 0x4 - core index']
  #allocation1 [shape = 'u32[144,128]{1,0:T(1,128)}', space=vmem, size = 0x12000, scoped, tag = 'internal scratch']
  #allocation2 [shape = 'f32[1,1]{1,0:T(1,128)S(1)}', space=vmem, size = 0x200, scoped, tag = 'scoped memory for tpu_custom_call.1']
  %s0 = inlined_call_operand.vmem [shape: bf16[32,128], index: 0, kind: input, shape index: {}]
  %s1 = inlined_call_operand.vmem [shape: bf16[16,32], index: 1, kind: input, shape index: {}]
  %s2 = inlined_call_operand.vmem [shape: f32[16,1], index: 2, kind: input, shape index: {}]
  %s3 = inlined_call_operand.vmem [shape: bf16[32,16], index: 3, kind: input, shape index: {}]
  %s4 = inlined_call_operand.vmem [shape: f32[32,1], index: 4, kind: input, shape index: {}]
  %s5 = inlined_call_operand.vmem [shape: bf16[16,32], index: 5, kind: input, shape index: {}]
  %s6 = inlined_call_operand.vmem [shape: f32[16,1], index: 6, kind: input, shape index: {}]
  %s7 = inlined_call_operand.vmem [shape: bf16[32,16], index: 7, kind: input, shape index: {}]
  %s8 = inlined_call_operand.vmem [shape: f32[32,1], index: 8, kind: input, shape index: {}]
  %s9 = inlined_call_operand.vmem [shape: f32[32,1], index: 9, kind: input, shape index: {}]
  %s10 = inlined_call_operand.<no memory space> [shape: f32[1,1], index: 10, kind: input, shape index: {}]
  %s11 = inlined_call_operand.hbm [shape: f32[1,128], index: 11, kind: output, shape index: {}]
  %s12 = sld [smem:[#allocation0]]
  $region54: #{tpu_custom_call.1} parent=0
    _
  %s14 = ssub.s32 1, %s12
  %s15 = scalar_select 0, %s14, %s12
  %v16 = vstv %s10
  %17 = vst [vmem:[#allocation2] sm:$0x1] %v16
  $region1: #{tpu_custom_call.1} parent=0
    #allocation3 [shape = 'u8[512]{0}', space=vmem, size = 0x400, scoped, tag = 'output window, operand 0, single buffered']
    #allocation4 [shape = 's32[1]{0}', space=sflag, size = 0x4, scoped, tag = 'scoped memory for tpu_custom_call.1']
    %18 = vsyncpa [#allocation4], 0
    // Predicated region
    $region2: #{tpu_custom_call.1} parent=1 // pred_check
      _
    $region3: #{tpu_custom_call.1} parent=1 // pred_check_branch
      %20 = sbr.rel (0) target = $region5
    $region4: #{tpu_custom_call.1} parent=1 // pred_region
      _
    $region5: #{tpu_custom_call.1} parent=1 // pred_fallthru
      _
    // Predicated region
    $region6: #{tpu_custom_call.1} parent=1 // pred_check
      _
    $region7: #{tpu_custom_call.1} parent=1 // pred_check_branch
      %22 = sbr.rel (0) target = $region9
    $region8: #{tpu_custom_call.1} parent=1 // pred_region
      _
    $region9: #{tpu_custom_call.1} parent=1 // pred_fallthru
      _
    // Predicated region
    $region10: #{tpu_custom_call.1} parent=1 // pred_check
      _
    $region11: #{tpu_custom_call.1} parent=1 // pred_check_branch
      %24 = sbr.rel (0) target = $region13
    $region12: #{tpu_custom_call.1} parent=1 // pred_region
      _
    $region13: #{tpu_custom_call.1} parent=1 // pred_fallthru
      _
    // Predicated region
    $region14: #{tpu_custom_call.1} parent=1 // pred_check
      _
    $region15: #{tpu_custom_call.1} parent=1 // pred_check_branch
      %26 = sbr.rel (0) target = $region17
    $region16: #{tpu_custom_call.1} parent=1 // pred_region
      _
    $region17: #{tpu_custom_call.1} parent=1 // pred_fallthru
      _
    // Predicated region
    $region18: #{tpu_custom_call.1} parent=1 // pred_check
      _
    $region19: #{tpu_custom_call.1} parent=1 // pred_check_branch
      %28 = sbr.rel (0) target = $region21
    $region20: #{tpu_custom_call.1} parent=1 // pred_region
      _
    $region21: #{tpu_custom_call.1} parent=1 // pred_fallthru
      _
    // Predicated region
    $region22: #{tpu_custom_call.1} parent=1 // pred_check
      _
    $region23: #{tpu_custom_call.1} parent=1 // pred_check_branch
      %30 = sbr.rel (0) target = $region25
    $region24: #{tpu_custom_call.1} parent=1 // pred_region
      _
    $region25: #{tpu_custom_call.1} parent=1 // pred_fallthru
      _
    // Predicated region
    $region26: #{tpu_custom_call.1} parent=1 // pred_check
      _
    $region27: #{tpu_custom_call.1} parent=1 // pred_check_branch
      %32 = sbr.rel (0) target = $region29
    $region28: #{tpu_custom_call.1} parent=1 // pred_region
      _
    $region29: #{tpu_custom_call.1} parent=1 // pred_fallthru
      _
    // Predicated region
    $region30: #{tpu_custom_call.1} parent=1 // pred_check
      _
    $region31: #{tpu_custom_call.1} parent=1 // pred_check_branch
      %34 = sbr.rel (0) target = $region33
    $region32: #{tpu_custom_call.1} parent=1 // pred_region
      _
    $region33: #{tpu_custom_call.1} parent=1 // pred_fallthru
      _
    // Predicated region
    $region34: #{tpu_custom_call.1} parent=1 // pred_check
      _
    $region35: #{tpu_custom_call.1} parent=1 // pred_check_branch
      %36 = sbr.rel (0) target = $region37
    $region36: #{tpu_custom_call.1} parent=1 // pred_region
      _
    $region37: #{tpu_custom_call.1} parent=1 // pred_fallthru
      _
    // Predicated region
    $region38: #{tpu_custom_call.1} parent=1 // pred_check
      _
    $region39: #{tpu_custom_call.1} parent=1 // pred_check_branch
      %38 = sbr.rel (0) target = $region41
    $region40: #{tpu_custom_call.1} parent=1 // pred_region
      _
    $region41: #{tpu_custom_call.1} parent=1 // pred_fallthru
      _
    // Predicated region
    $region42: #{tpu_custom_call.1} parent=1 // pred_check
      _
    $region43: #{tpu_custom_call.1} parent=1 // pred_check_branch
      %40 = sbr.rel (0) target = $region45
    $region44: #{tpu_custom_call.1} parent=1 // pred_region
      _
    $region45: #{tpu_custom_call.1} parent=1 // pred_fallthru
      _
    %v42 = vld [vmem:[%s0] sm:$0xf]
    %v43 = vld [vmem:[%s0 + $0x4] sm:$0xf]
    %v44 = vld [vmem:[%s0 + $0x8] sm:$0xf]
    %v45 = vld [vmem:[%s0 + $0xc] sm:$0xf]
    %v46 = vunpack.c.l.bf16 %v42
    %v47 = vunpack.c.l.bf16 %v43
    %v48 = vunpack.c.l.bf16 %v44
    %v49 = vunpack.c.l.bf16 %v45
    %v50 = vld [vmem:[%s1] sm:$0xf]
    %v51 = vld [vmem:[%s1 + $0x4] sm:$0xf]
    %v52 = vld [vmem:[%s2] sm:$0xff]
    %v53 = vld [vmem:[%s2 + $0x8] sm:$0xff]
    %v54 = vld [vmem:[%s3] sm:$0xf]
    %v55 = vld [vmem:[%s3 + $0x4] sm:$0xf]
    %v56 = vld [vmem:[%s3 + $0x8] sm:$0xf]
    %v57 = vld [vmem:[%s3 + $0xc] sm:$0xf]
    %v58 = vld [vmem:[%s4] sm:$0xff]
    %v59 = vld [vmem:[%s4 + $0x8] sm:$0xff]
    %v60 = vld [vmem:[%s4 + $0x10] sm:$0xff]
    %v61 = vld [vmem:[%s4 + $0x18] sm:$0xff]
    %63 = vset.pattern.permute.xlu0 0
    %64 = vperm.xlu0 %63, %v52
    %v65 = vpop.permute.xlu0 %64
    %68 = vset.pattern.permute.xlu0 0
    %69 = vperm.xlu0 %68, %v53
    %v70 = vpop.permute.xlu0 %69
    %v74 = vunpack.c.l.b16 %v50
    %v75 = vunpack.c.l.b16 %v51
    %v76 = vpack.c.b16 %v75, %v74
    %v81 = vunpack.c.l.b16 %v42
    %v82 = vunpack.c.l.b16 %v43
    %v83 = vunpack.c.l.b16 %v44
    %v84 = vunpack.c.l.b16 %v45
    %v85 = vpack.c.b16 %v82, %v81
    %v86 = vpack.c.b16 %v84, %v83
    %vm89 = vcmask 261120
    %v91 = vsel %vm89, %v76, 0
    %93 = vmatprep.subr.bf16.mxu0 0
    %94 = vmatpush1.bf16.msra.mxu0 %v85
    %95 = vmatprep.subr.bf16.mxu0 0
    %96 = vmatpush1.bf16.msra.mxu0 %v86
    %97 = vmatprep.subr.bf16.mxu0 0
    %98 = vmatpush1.bf16.msra.mxu0 0
    %99 = vmatprep.subr.bf16.mxu0 0
    %100 = vmatpush1.bf16.msra.mxu0 0
    %101 = vmatprep.subr.bf16.mxu0 0
    %102 = vmatpush1.bf16.msra.mxu0 0
    %103 = vmatprep.subr.bf16.mxu0 0
    %104 = vmatpush1.bf16.msra.mxu0 0
    %105 = vmatprep.subr.bf16.mxu0 0
    %106 = vmatpush1.bf16.msra.mxu0 0
    %107 = vmatprep.subr.bf16.mxu0 0
    %108 = vmatpush1.bf16.msra.mxu0 0
    %109 = vmatprep.subr.bf16.mxu0 0
    %110 = vmatpush1.bf16.msra.mxu0 0
    %111 = vmatprep.subr.bf16.mxu0 0
    %112 = vmatpush1.bf16.msra.mxu0 0
    %113 = vmatprep.subr.bf16.mxu0 0
    %114 = vmatpush1.bf16.msra.mxu0 0
    %115 = vmatprep.subr.bf16.mxu0 0
    %116 = vmatpush1.bf16.msra.mxu0 0
    %117 = vmatprep.subr.bf16.mxu0 0
    %118 = vmatpush1.bf16.msra.mxu0 0
    %119 = vmatprep.subr.bf16.mxu0 0
    %120 = vmatpush1.bf16.msra.mxu0 0
    %121 = vmatprep.subr.bf16.mxu0 0
    %122 = vmatpush1.bf16.msra.mxu0 0
    %123 = vmatprep.subr.bf16.mxu0 0
    %124 = vmatpush1.bf16.msra.mxu0 0
    %125 = vmatprep.mubr.bf16.mxu0 0
    %126 = vmatmul.mubr.bf16.gmra.mrb[0].mxu0 %v91
    %v127 = vpop.f32.mrb[0].mxu0
    %v128 = vadd.f32 %v65, %v127
    %v129 = vpop.f32.mrb[0].mxu0
    %v130 = vpop.f32.mrb[0].mxu0
    %v131 = vadd.f32 %v70, %v130
    %v132 = vpop.f32.mrb[0].mxu0
    %133 = vdwg.mxu0
    %v134 = vmax.f32 %v128, 0.0
    %v135 = vmax.f32 %v131, 0.0
    %v136 = vpack.c.bf16 %v135, %v134
    %138 = vset.pattern.permute.xlu0 0
    %139 = vperm.xlu0 %138, %v58
    %v140 = vpop.permute.xlu0 %139
    %143 = vset.pattern.permute.xlu0 0
    %144 = vperm.xlu0 %143, %v59
    %v145 = vpop.permute.xlu0 %144
    %148 = vset.pattern.permute.xlu0 0
    %149 = vperm.xlu0 %148, %v60
    %v150 = vpop.permute.xlu0 %149
    %153 = vset.pattern.permute.xlu0 0
    %154 = vperm.xlu0 %153, %v61
    %v155 = vpop.permute.xlu0 %154
    %v161 = vunpack.c.l.b16 %v54
    %v162 = vunpack.c.l.b16 %v55
    %v163 = vunpack.c.l.b16 %v56
    %v164 = vunpack.c.l.b16 %v57
    %v165 = vpack.c.b16 %v162, %v161
    %v166 = vpack.c.b16 %v164, %v163
    %vm167 = vcmask 130048
    %v169 = vsel %vm167, %v165, 0
    %v172 = vsel %vm167, %v166, 0
    %174 = vmatprep.subr.bf16.mxu0 0
    %175 = vmatpush1.bf16.msra.mxu0 %v136
    %176 = vmatprep.subr.bf16.mxu0 0
    %177 = vmatpush1.bf16.msra.mxu0 0
    %178 = vmatprep.subr.bf16.mxu0 0
    %179 = vmatpush1.bf16.msra.mxu0 0
    %180 = vmatprep.subr.bf16.mxu0 0
    %181 = vmatpush1.bf16.msra.mxu0 0
    %182 = vmatprep.subr.bf16.mxu0 0
    %183 = vmatpush1.bf16.msra.mxu0 0
    %184 = vmatprep.subr.bf16.mxu0 0
    %185 = vmatpush1.bf16.msra.mxu0 0
    %186 = vmatprep.subr.bf16.mxu0 0
    %187 = vmatpush1.bf16.msra.mxu0 0
    %188 = vmatprep.subr.bf16.mxu0 0
    %189 = vmatpush1.bf16.msra.mxu0 0
    %190 = vmatprep.subr.bf16.mxu0 0
    %191 = vmatpush1.bf16.msra.mxu0 0
    %192 = vmatprep.subr.bf16.mxu0 0
    %193 = vmatpush1.bf16.msra.mxu0 0
    %194 = vmatprep.subr.bf16.mxu0 0
    %195 = vmatpush1.bf16.msra.mxu0 0
    %196 = vmatprep.subr.bf16.mxu0 0
    %197 = vmatpush1.bf16.msra.mxu0 0
    %198 = vmatprep.subr.bf16.mxu0 0
    %199 = vmatpush1.bf16.msra.mxu0 0
    %200 = vmatprep.subr.bf16.mxu0 0
    %201 = vmatpush1.bf16.msra.mxu0 0
    %202 = vmatprep.subr.bf16.mxu0 0
    %203 = vmatpush1.bf16.msra.mxu0 0
    %204 = vmatprep.subr.bf16.mxu0 0
    %205 = vmatpush1.bf16.msra.mxu0 0
    %206 = vmatprep.mubr.bf16.mxu0 0
    %207 = vmatmul.mubr.bf16.gmra.mrb[0].mxu0 %v169
    %v208 = vpop.f32.mrb[0].mxu0
    %v209 = vadd.f32 %v140, %v208
    %v210 = vpop.f32.mrb[0].mxu0
    %v211 = vpop.f32.mrb[0].mxu0
    %v212 = vadd.f32 %v145, %v211
    %v213 = vpop.f32.mrb[0].mxu0
    %214 = vmatprep.mubr.bf16.mxu0 0
    %215 = vmatmul.mubr.bf16.gmra.mrb[0].mxu0 %v172
    %v216 = vpop.f32.mrb[0].mxu0
    %v217 = vadd.f32 %v150, %v216
    %v218 = vpop.f32.mrb[0].mxu0
    %v219 = vpop.f32.mrb[0].mxu0
    %v220 = vadd.f32 %v155, %v219
    %v221 = vpop.f32.mrb[0].mxu0
    %222 = vdwg.mxu0
    %v223 = vadd.f32 %v209, %v46
    %v224 = vadd.f32 %v212, %v47
    %v225 = vadd.f32 %v217, %v48
    %v226 = vadd.f32 %v220, %v49
    %v227 = vmax.f32 %v223, 0.0
    %v228 = vmax.f32 %v224, 0.0
    %v229 = vmax.f32 %v225, 0.0
    %v230 = vmax.f32 %v226, 0.0
    %v231 = vld [vmem:[%s5] sm:$0xf]
    %v232 = vld [vmem:[%s5 + $0x4] sm:$0xf]
    %v233 = vld [vmem:[%s6] sm:$0xff]
    %v234 = vld [vmem:[%s6 + $0x8] sm:$0xff]
    %v235 = vld [vmem:[%s7] sm:$0xf]
    %v236 = vld [vmem:[%s7 + $0x4] sm:$0xf]
    %v237 = vld [vmem:[%s7 + $0x8] sm:$0xf]
    %v238 = vld [vmem:[%s7 + $0xc] sm:$0xf]
    %v239 = vld [vmem:[%s8] sm:$0xff]
    %v240 = vld [vmem:[%s8 + $0x8] sm:$0xff]
    %v241 = vld [vmem:[%s8 + $0x10] sm:$0xff]
    %v242 = vld [vmem:[%s8 + $0x18] sm:$0xff]
    %v243 = vpack.c.bf16 %v228, %v227
    %v244 = vpack.c.bf16 %v230, %v229
    %246 = vset.pattern.permute.xlu0 0
    %247 = vperm.xlu0 %246, %v233
    %v248 = vpop.permute.xlu0 %247
    %251 = vset.pattern.permute.xlu0 0
    %252 = vperm.xlu0 %251, %v234
    %v253 = vpop.permute.xlu0 %252
    %v257 = vunpack.c.l.b16 %v231
    %v258 = vunpack.c.l.b16 %v232
    %v259 = vpack.c.b16 %v258, %v257
    %v261 = vsel %vm89, %v259, 0
    %263 = vmatprep.subr.bf16.mxu0 0
    %264 = vmatpush1.bf16.msra.mxu0 %v243
    %265 = vmatprep.subr.bf16.mxu0 0
    %266 = vmatpush1.bf16.msra.mxu0 %v244
    %267 = vmatprep.subr.bf16.mxu0 0
    %268 = vmatpush1.bf16.msra.mxu0 0
    %269 = vmatprep.subr.bf16.mxu0 0
    %270 = vmatpush1.bf16.msra.mxu0 0
    %271 = vmatprep.subr.bf16.mxu0 0
    %272 = vmatpush1.bf16.msra.mxu0 0
    %273 = vmatprep.subr.bf16.mxu0 0
    %274 = vmatpush1.bf16.msra.mxu0 0
    %275 = vmatprep.subr.bf16.mxu0 0
    %276 = vmatpush1.bf16.msra.mxu0 0
    %277 = vmatprep.subr.bf16.mxu0 0
    %278 = vmatpush1.bf16.msra.mxu0 0
    %279 = vmatprep.subr.bf16.mxu0 0
    %280 = vmatpush1.bf16.msra.mxu0 0
    %281 = vmatprep.subr.bf16.mxu0 0
    %282 = vmatpush1.bf16.msra.mxu0 0
    %283 = vmatprep.subr.bf16.mxu0 0
    %284 = vmatpush1.bf16.msra.mxu0 0
    %285 = vmatprep.subr.bf16.mxu0 0
    %286 = vmatpush1.bf16.msra.mxu0 0
    %287 = vmatprep.subr.bf16.mxu0 0
    %288 = vmatpush1.bf16.msra.mxu0 0
    %289 = vmatprep.subr.bf16.mxu0 0
    %290 = vmatpush1.bf16.msra.mxu0 0
    %291 = vmatprep.subr.bf16.mxu0 0
    %292 = vmatpush1.bf16.msra.mxu0 0
    %293 = vmatprep.subr.bf16.mxu0 0
    %294 = vmatpush1.bf16.msra.mxu0 0
    %295 = vmatprep.mubr.bf16.mxu0 0
    %296 = vmatmul.mubr.bf16.gmra.mrb[0].mxu0 %v261
    %v297 = vpop.f32.mrb[0].mxu0
    %v298 = vadd.f32 %v248, %v297
    %v299 = vpop.f32.mrb[0].mxu0
    %v300 = vpop.f32.mrb[0].mxu0
    %v301 = vadd.f32 %v253, %v300
    %v302 = vpop.f32.mrb[0].mxu0
    %303 = vdwg.mxu0
    %v304 = vmax.f32 %v298, 0.0
    %v305 = vmax.f32 %v301, 0.0
    %v306 = vpack.c.bf16 %v305, %v304
    %308 = vset.pattern.permute.xlu0 0
    %309 = vperm.xlu0 %308, %v239
    %v310 = vpop.permute.xlu0 %309
    %313 = vset.pattern.permute.xlu0 0
    %314 = vperm.xlu0 %313, %v240
    %v315 = vpop.permute.xlu0 %314
    %318 = vset.pattern.permute.xlu0 0
    %319 = vperm.xlu0 %318, %v241
    %v320 = vpop.permute.xlu0 %319
    %323 = vset.pattern.permute.xlu0 0
    %324 = vperm.xlu0 %323, %v242
    %v325 = vpop.permute.xlu0 %324
    %v331 = vunpack.c.l.b16 %v235
    %v332 = vunpack.c.l.b16 %v236
    %v333 = vunpack.c.l.b16 %v237
    %v334 = vunpack.c.l.b16 %v238
    %v335 = vpack.c.b16 %v332, %v331
    %v336 = vpack.c.b16 %v334, %v333
    %v338 = vsel %vm167, %v335, 0
    %v341 = vsel %vm167, %v336, 0
    %343 = vmatprep.subr.bf16.mxu0 0
    %344 = vmatpush1.bf16.msra.mxu0 %v306
    %345 = vmatprep.subr.bf16.mxu0 0
    %346 = vmatpush1.bf16.msra.mxu0 0
    %347 = vmatprep.subr.bf16.mxu0 0
    %348 = vmatpush1.bf16.msra.mxu0 0
    %349 = vmatprep.subr.bf16.mxu0 0
    %350 = vmatpush1.bf16.msra.mxu0 0
    %351 = vmatprep.subr.bf16.mxu0 0
    %352 = vmatpush1.bf16.msra.mxu0 0
    %353 = vmatprep.subr.bf16.mxu0 0
    %354 = vmatpush1.bf16.msra.mxu0 0
    %355 = vmatprep.subr.bf16.mxu0 0
    %356 = vmatpush1.bf16.msra.mxu0 0
    %357 = vmatprep.subr.bf16.mxu0 0
    %358 = vmatpush1.bf16.msra.mxu0 0
    %359 = vmatprep.subr.bf16.mxu0 0
    %360 = vmatpush1.bf16.msra.mxu0 0
    %361 = vmatprep.subr.bf16.mxu0 0
    %362 = vmatpush1.bf16.msra.mxu0 0
    %363 = vmatprep.subr.bf16.mxu0 0
    %364 = vmatpush1.bf16.msra.mxu0 0
    %365 = vmatprep.subr.bf16.mxu0 0
    %366 = vmatpush1.bf16.msra.mxu0 0
    %367 = vmatprep.subr.bf16.mxu0 0
    %368 = vmatpush1.bf16.msra.mxu0 0
    %369 = vmatprep.subr.bf16.mxu0 0
    %370 = vmatpush1.bf16.msra.mxu0 0
    %371 = vmatprep.subr.bf16.mxu0 0
    %372 = vmatpush1.bf16.msra.mxu0 0
    %373 = vmatprep.subr.bf16.mxu0 0
    %374 = vmatpush1.bf16.msra.mxu0 0
    %375 = vmatprep.mubr.bf16.mxu0 0
    %376 = vmatmul.mubr.bf16.gmra.mrb[0].mxu0 %v338
    %v377 = vpop.f32.mrb[0].mxu0
    %v378 = vadd.f32 %v310, %v377
    %v379 = vpop.f32.mrb[0].mxu0
    %v380 = vpop.f32.mrb[0].mxu0
    %v381 = vadd.f32 %v315, %v380
    %v382 = vpop.f32.mrb[0].mxu0
    %383 = vmatprep.mubr.bf16.mxu0 0
    %384 = vmatmul.mubr.bf16.gmra.mrb[0].mxu0 %v341
    %v385 = vpop.f32.mrb[0].mxu0
    %v386 = vadd.f32 %v320, %v385
    %v387 = vpop.f32.mrb[0].mxu0
    %v388 = vpop.f32.mrb[0].mxu0
    %v389 = vadd.f32 %v325, %v388
    %v390 = vpop.f32.mrb[0].mxu0
    %391 = vdwg.mxu0
    %v392 = vadd.f32 %v378, %v227
    %v393 = vadd.f32 %v381, %v228
    %v394 = vadd.f32 %v386, %v229
    %v395 = vadd.f32 %v389, %v230
    %v396 = vmax.f32 %v392, 0.0
    %v397 = vmax.f32 %v393, 0.0
    %v398 = vmax.f32 %v394, 0.0
    %v399 = vmax.f32 %v395, 0.0
    %v400 = vld [vmem:[%s9] sm:$0xff]
    %v401 = vld [vmem:[%s9 + $0x8] sm:$0xff]
    %v402 = vld [vmem:[%s9 + $0x10] sm:$0xff]
    %v403 = vld [vmem:[%s9 + $0x18] sm:$0xff]
    %v404 = vld [vmem:[#allocation2] sm:$0x1]
    %406 = vset.pattern.permute.xlu0 0
    %407 = vperm.xlu0 %406, %v400
    %v408 = vpop.permute.xlu0 %407
    %411 = vset.pattern.permute.xlu0 0
    %412 = vperm.xlu0 %411, %v401
    %v413 = vpop.permute.xlu0 %412
    %416 = vset.pattern.permute.xlu0 0
    %417 = vperm.xlu0 %416, %v402
    %v418 = vpop.permute.xlu0 %417
    %421 = vset.pattern.permute.xlu0 0
    %422 = vperm.xlu0 %421, %v403
    %v423 = vpop.permute.xlu0 %422
    %v425 = vmul.f32 %v396, %v408
    %v426 = vmul.f32 %v397, %v413
    %v427 = vmul.f32 %v398, %v418
    %v428 = vmul.f32 %v399, %v423
    %v429 = vadd.f32 %v425, %v426
    %v430 = vadd.f32 %v429, %v427
    %v431 = vadd.f32 %v430, %v428
    %v432 = vrot.slane %v431, 4
    %v433 = vadd.f32 %v431, %v432
    %v434 = vrot.slane %v433, 2
    %v435 = vadd.f32 %v433, %v434
    %v436 = vrot.slane %v435, 1
    %v437 = vadd.f32 %v435, %v436
    %439 = vset.pattern.permute.xlu0 0
    %440 = vperm.xlu0 %439, %v404
    %v441 = vpop.permute.xlu0 %440
    %v443 = vlaneseq
    %v444 = vshrl.u32 %v443, 7
    %v445 = vsub.s32 0, %v444
    %v446 = vrot.slane %v441, %v445
    %v447 = vadd.f32 %v437, %v446
    %v448 = vxor.u32 %v447, 2147483648
    %v449 = vmul.f32 %v448, 1.442695
    %v450 = vpow.pop %v449
    %v451 = vadd.f32 %v450, 1.0
    %v452 = vrcp.pop %v451
    %v453 = vmul.f32 1.0, %v452
    %454 = vst [vmem:[#allocation3] sm:$0x1] %v453
    // Predicated region
    $region46: #{tpu_custom_call.1} parent=1 // pred_check
      _
    $region47: #{tpu_custom_call.1} parent=1 // pred_check_branch
      %456 = sbr.rel (0) target = $region49
    $region48: #{tpu_custom_call.1} parent=1 // pred_region
      %s458 = ssub.s32 16, 16
      %459 = vsyncadd [#allocation4], %s458
      %s461 = sshll.u32 [#allocation3], 4
      %s462 = int_to_ptr.vmem [resolvable:$true] %s461
      %464 = dma.vmem_to_hbm [thread:$0]  %s462, 16, %s11, [#allocation4]
    $region49: #{tpu_custom_call.1} parent=1 // pred_fallthru
      _
    // Predicated region
    $region50: #{tpu_custom_call.1} parent=1 // pred_check
      _
    $region51: #{tpu_custom_call.1} parent=1 // pred_check_branch
      %466 = sbr.rel (0) target = $region53
    $region52: #{tpu_custom_call.1} parent=1 // pred_region
      %467 = dma.done [#allocation4], 16
    $region53: #{tpu_custom_call.1} parent=1 // pred_fallthru
      _
    %468 = vsyncpa [#allocation4], 1

// kernel: tpu_custom_call.1
$region0: #{tpu_custom_call.1}
  #allocation0 [shape = 'u32[]', space=smem, size = 0x4, offset = 0x4, fixed_abs, tag = 'smem constant byte address 0x4 - core index']
  #allocation1 [shape = 'u32[144,128]{1,0:T(1,128)}', space=vmem, size = 0x12000, scoped, tag = 'internal scratch']
  #allocation2 [shape = 'f32[1,1]{1,0:T(1,128)S(1)}', space=vmem, size = 0x200, scoped, tag = 'scoped memory for tpu_custom_call.1']
  %s0 = inlined_call_operand.vmem [shape: bf16[32,128], index: 0, kind: input, shape index: {}]
  %s1 = inlined_call_operand.vmem [shape: bf16[16,32], index: 1, kind: input, shape index: {}]
  %s2 = inlined_call_operand.vmem [shape: f32[16,1], index: 2, kind: input, shape index: {}]
  %s3 = inlined_call_operand.vmem [shape: bf16[32,16], index: 3, kind: input, shape index: {}]
  %s4 = inlined_call_operand.vmem [shape: f32[32,1], index: 4, kind: input, shape index: {}]
  %s5 = inlined_call_operand.vmem [shape: bf16[16,32], index: 5, kind: input, shape index: {}]
  %s6 = inlined_call_operand.vmem [shape: f32[16,1], index: 6, kind: input, shape index: {}]
  %s7 = inlined_call_operand.vmem [shape: bf16[32,16], index: 7, kind: input, shape index: {}]
  %s8 = inlined_call_operand.vmem [shape: f32[32,1], index: 8, kind: input, shape index: {}]
  %s9 = inlined_call_operand.vmem [shape: f32[32,1], index: 9, kind: input, shape index: {}]
  %s10 = inlined_call_operand.<no memory space> [shape: f32[1,1], index: 10, kind: input, shape index: {}]
  %s11 = inlined_call_operand.hbm [shape: f32[1,128], index: 11, kind: output, shape index: {}]
  %s12 = sld [smem:[#allocation0]]
  $region54: #{tpu_custom_call.1} parent=0
    _
  %s14 = ssub.s32 1, %s12
  %s15 = scalar_select 0, %s14, %s12
  %v16 = vstv %s10
  %17 = vst [vmem:[#allocation2] sm:$0x1] %v16
  $region1: #{tpu_custom_call.1} parent=0
    #allocation3 [shape = 'u8[512]{0}', space=vmem, size = 0x400, scoped, tag = 'output window, operand 0, single buffered']
    #allocation4 [shape = 's32[1]{0}', space=sflag, size = 0x4, scoped, tag = 'scoped memory for tpu_custom_call.1']
    %18 = vsyncpa [#allocation4], 0
    // Predicated region
    $region2: #{tpu_custom_call.1} parent=1 // pred_check
      _
    $region3: #{tpu_custom_call.1} parent=1 // pred_check_branch
      %20 = sbr.rel (0) target = $region5
    $region4: #{tpu_custom_call.1} parent=1 // pred_region
      _
    $region5: #{tpu_custom_call.1} parent=1 // pred_fallthru
      _
    // Predicated region
    $region6: #{tpu_custom_call.1} parent=1 // pred_check
      _
    $region7: #{tpu_custom_call.1} parent=1 // pred_check_branch
      %22 = sbr.rel (0) target = $region9
    $region8: #{tpu_custom_call.1} parent=1 // pred_region
      _
    $region9: #{tpu_custom_call.1} parent=1 // pred_fallthru
      _
    // Predicated region
    $region10: #{tpu_custom_call.1} parent=1 // pred_check
      _
    $region11: #{tpu_custom_call.1} parent=1 // pred_check_branch
      %24 = sbr.rel (0) target = $region13
    $region12: #{tpu_custom_call.1} parent=1 // pred_region
      _
    $region13: #{tpu_custom_call.1} parent=1 // pred_fallthru
      _
    // Predicated region
    $region14: #{tpu_custom_call.1} parent=1 // pred_check
      _
    $region15: #{tpu_custom_call.1} parent=1 // pred_check_branch
      %26 = sbr.rel (0) target = $region17
    $region16: #{tpu_custom_call.1} parent=1 // pred_region
      _
    $region17: #{tpu_custom_call.1} parent=1 // pred_fallthru
      _
    // Predicated region
    $region18: #{tpu_custom_call.1} parent=1 // pred_check
      _
    $region19: #{tpu_custom_call.1} parent=1 // pred_check_branch
      %28 = sbr.rel (0) target = $region21
    $region20: #{tpu_custom_call.1} parent=1 // pred_region
      _
    $region21: #{tpu_custom_call.1} parent=1 // pred_fallthru
      _
    // Predicated region
    $region22: #{tpu_custom_call.1} parent=1 // pred_check
      _
    $region23: #{tpu_custom_call.1} parent=1 // pred_check_branch
      %30 = sbr.rel (0) target = $region25
    $region24: #{tpu_custom_call.1} parent=1 // pred_region
      _
    $region25: #{tpu_custom_call.1} parent=1 // pred_fallthru
      _
    // Predicated region
    $region26: #{tpu_custom_call.1} parent=1 // pred_check
      _
    $region27: #{tpu_custom_call.1} parent=1 // pred_check_branch
      %32 = sbr.rel (0) target = $region29
    $region28: #{tpu_custom_call.1} parent=1 // pred_region
      _
    $region29: #{tpu_custom_call.1} parent=1 // pred_fallthru
      _
    // Predicated region
    $region30: #{tpu_custom_call.1} parent=1 // pred_check
      _
    $region31: #{tpu_custom_call.1} parent=1 // pred_check_branch
      %34 = sbr.rel (0) target = $region33
    $region32: #{tpu_custom_call.1} parent=1 // pred_region
      _
    $region33: #{tpu_custom_call.1} parent=1 // pred_fallthru
      _
    // Predicated region
    $region34: #{tpu_custom_call.1} parent=1 // pred_check
      _
    $region35: #{tpu_custom_call.1} parent=1 // pred_check_branch
      %36 = sbr.rel (0) target = $region37
    $region36: #{tpu_custom_call.1} parent=1 // pred_region
      _
    $region37: #{tpu_custom_call.1} parent=1 // pred_fallthru
      _
    // Predicated region
    $region38: #{tpu_custom_call.1} parent=1 // pred_check
      _
    $region39: #{tpu_custom_call.1} parent=1 // pred_check_branch
      %38 = sbr.rel (0) target = $region41
    $region40: #{tpu_custom_call.1} parent=1 // pred_region
      _
    $region41: #{tpu_custom_call.1} parent=1 // pred_fallthru
      _
    // Predicated region
    $region42: #{tpu_custom_call.1} parent=1 // pred_check
      _
    $region43: #{tpu_custom_call.1} parent=1 // pred_check_branch
      %40 = sbr.rel (0) target = $region45
    $region44: #{tpu_custom_call.1} parent=1 // pred_region
      _
    $region45: #{tpu_custom_call.1} parent=1 // pred_fallthru
      _
    %v42 = vld [vmem:[%s0] sm:$0xf]
    %v43 = vld [vmem:[%s0 + $0x4] sm:$0xf]
    %v44 = vld [vmem:[%s0 + $0x8] sm:$0xf]
    %v45 = vld [vmem:[%s0 + $0xc] sm:$0xf]
    %v46 = vunpack.c.l.bf16 %v42
    %v47 = vunpack.c.l.bf16 %v43
    %v48 = vunpack.c.l.bf16 %v44
    %v49 = vunpack.c.l.bf16 %v45
    %v50 = vld [vmem:[%s1] sm:$0xf]
    %v51 = vld [vmem:[%s1 + $0x4] sm:$0xf]
    %v52 = vld [vmem:[%s2] sm:$0xff]
    %v53 = vld [vmem:[%s2 + $0x8] sm:$0xff]
    %v54 = vld [vmem:[%s3] sm:$0xf]
    %v55 = vld [vmem:[%s3 + $0x4] sm:$0xf]
    %v56 = vld [vmem:[%s3 + $0x8] sm:$0xf]
    %v57 = vld [vmem:[%s3 + $0xc] sm:$0xf]
    %v58 = vld [vmem:[%s4] sm:$0xff]
    %v59 = vld [vmem:[%s4 + $0x8] sm:$0xff]
    %v60 = vld [vmem:[%s4 + $0x10] sm:$0xff]
    %v61 = vld [vmem:[%s4 + $0x18] sm:$0xff]
    %63 = vset.pattern.permute.xlu0 0
    %64 = vperm.xlu0 %63, %v52
    %v65 = vpop.permute.xlu0 %64
    %68 = vset.pattern.permute.xlu0 0
    %69 = vperm.xlu0 %68, %v53
    %v70 = vpop.permute.xlu0 %69
    %v74 = vunpack.c.l.b16 %v50
    %v75 = vunpack.c.l.b16 %v51
    %v76 = vpack.c.b16 %v75, %v74
    %v81 = vunpack.c.l.b16 %v42
    %v82 = vunpack.c.l.b16 %v43
    %v83 = vunpack.c.l.b16 %v44
    %v84 = vunpack.c.l.b16 %v45
    %v85 = vpack.c.b16 %v82, %v81
    %v86 = vpack.c.b16 %v84, %v83
    %vm89 = vcmask 261120
    %v91 = vsel %vm89, %v76, 0
    %93 = vmatprep.subr.bf16.mxu0 0
    %94 = vmatpush1.bf16.msra.mxu0 %v85
    %95 = vmatprep.subr.bf16.mxu0 0
    %96 = vmatpush1.bf16.msra.mxu0 %v86
    %97 = vmatprep.subr.bf16.mxu0 0
    %98 = vmatpush1.bf16.msra.mxu0 0
    %99 = vmatprep.subr.bf16.mxu0 0
    %100 = vmatpush1.bf16.msra.mxu0 0
    %101 = vmatprep.subr.bf16.mxu0 0
    %102 = vmatpush1.bf16.msra.mxu0 0
    %103 = vmatprep.subr.bf16.mxu0 0
    %104 = vmatpush1.bf16.msra.mxu0 0
    %105 = vmatprep.subr.bf16.mxu0 0
    %106 = vmatpush1.bf16.msra.mxu0 0
    %107 = vmatprep.subr.bf16.mxu0 0
    %108 = vmatpush1.bf16.msra.mxu0 0
    %109 = vmatprep.subr.bf16.mxu0 0
    %110 = vmatpush1.bf16.msra.mxu0 0
    %111 = vmatprep.subr.bf16.mxu0 0
    %112 = vmatpush1.bf16.msra.mxu0 0
    %113 = vmatprep.subr.bf16.mxu0 0
    %114 = vmatpush1.bf16.msra.mxu0 0
    %115 = vmatprep.subr.bf16.mxu0 0
    %116 = vmatpush1.bf16.msra.mxu0 0
    %117 = vmatprep.subr.bf16.mxu0 0
    %118 = vmatpush1.bf16.msra.mxu0 0
    %119 = vmatprep.subr.bf16.mxu0 0
    %120 = vmatpush1.bf16.msra.mxu0 0
    %121 = vmatprep.subr.bf16.mxu0 0
    %122 = vmatpush1.bf16.msra.mxu0 0
    %123 = vmatprep.subr.bf16.mxu0 0
    %124 = vmatpush1.bf16.msra.mxu0 0
    %125 = vmatprep.mubr.bf16.mxu0 0
    %126 = vmatmul.mubr.bf16.gmra.mrb[0].mxu0 %v91
    %v127 = vpop.f32.mrb[0].mxu0
    %v128 = vadd.f32 %v65, %v127
    %v129 = vpop.f32.mrb[0].mxu0
    %v130 = vpop.f32.mrb[0].mxu0
    %v131 = vadd.f32 %v70, %v130
    %v132 = vpop.f32.mrb[0].mxu0
    %133 = vdwg.mxu0
    %v134 = vmax.f32 %v128, 0.0
    %v135 = vmax.f32 %v131, 0.0
    %v136 = vpack.c.bf16 %v135, %v134
    %138 = vset.pattern.permute.xlu0 0
    %139 = vperm.xlu0 %138, %v58
    %v140 = vpop.permute.xlu0 %139
    %143 = vset.pattern.permute.xlu0 0
    %144 = vperm.xlu0 %143, %v59
    %v145 = vpop.permute.xlu0 %144
    %148 = vset.pattern.permute.xlu0 0
    %149 = vperm.xlu0 %148, %v60
    %v150 = vpop.permute.xlu0 %149
    %153 = vset.pattern.permute.xlu0 0
    %154 = vperm.xlu0 %153, %v61
    %v155 = vpop.permute.xlu0 %154
    %v161 = vunpack.c.l.b16 %v54
    %v162 = vunpack.c.l.b16 %v55
    %v163 = vunpack.c.l.b16 %v56
    %v164 = vunpack.c.l.b16 %v57
    %v165 = vpack.c.b16 %v162, %v161
    %v166 = vpack.c.b16 %v164, %v163
    %vm167 = vcmask 130048
    %v169 = vsel %vm167, %v165, 0
    %v172 = vsel %vm167, %v166, 0
    %174 = vmatprep.subr.bf16.mxu0 0
    %175 = vmatpush1.bf16.msra.mxu0 %v136
    %176 = vmatprep.subr.bf16.mxu0 0
    %177 = vmatpush1.bf16.msra.mxu0 0
    %178 = vmatprep.subr.bf16.mxu0 0
    %179 = vmatpush1.bf16.msra.mxu0 0
    %180 = vmatprep.subr.bf16.mxu0 0
    %181 = vmatpush1.bf16.msra.mxu0 0
    %182 = vmatprep.subr.bf16.mxu0 0
    %183 = vmatpush1.bf16.msra.mxu0 0
    %184 = vmatprep.subr.bf16.mxu0 0
    %185 = vmatpush1.bf16.msra.mxu0 0
    %186 = vmatprep.subr.bf16.mxu0 0
    %187 = vmatpush1.bf16.msra.mxu0 0
    %188 = vmatprep.subr.bf16.mxu0 0
    %189 = vmatpush1.bf16.msra.mxu0 0
    %190 = vmatprep.subr.bf16.mxu0 0
    %191 = vmatpush1.bf16.msra.mxu0 0
    %192 = vmatprep.subr.bf16.mxu0 0
    %193 = vmatpush1.bf16.msra.mxu0 0
    %194 = vmatprep.subr.bf16.mxu0 0
    %195 = vmatpush1.bf16.msra.mxu0 0
    %196 = vmatprep.subr.bf16.mxu0 0
    %197 = vmatpush1.bf16.msra.mxu0 0
    %198 = vmatprep.subr.bf16.mxu0 0
    %199 = vmatpush1.bf16.msra.mxu0 0
    %200 = vmatprep.subr.bf16.mxu0 0
    %201 = vmatpush1.bf16.msra.mxu0 0
    %202 = vmatprep.subr.bf16.mxu0 0
    %203 = vmatpush1.bf16.msra.mxu0 0
    %204 = vmatprep.subr.bf16.mxu0 0
    %205 = vmatpush1.bf16.msra.mxu0 0
    %206 = vmatprep.mubr.bf16.mxu0 0
    %207 = vmatmul.mubr.bf16.gmra.mrb[0].mxu0 %v169
    %v208 = vpop.f32.mrb[0].mxu0
    %v209 = vadd.f32 %v140, %v208
    %v210 = vpop.f32.mrb[0].mxu0
    %v211 = vpop.f32.mrb[0].mxu0
    %v212 = vadd.f32 %v145, %v211
    %v213 = vpop.f32.mrb[0].mxu0
    %214 = vmatprep.mubr.bf16.mxu0 0
    %215 = vmatmul.mubr.bf16.gmra.mrb[0].mxu0 %v172
    %v216 = vpop.f32.mrb[0].mxu0
    %v217 = vadd.f32 %v150, %v216
    %v218 = vpop.f32.mrb[0].mxu0
    %v219 = vpop.f32.mrb[0].mxu0
    %v220 = vadd.f32 %v155, %v219
    %v221 = vpop.f32.mrb[0].mxu0
    %222 = vdwg.mxu0
    %v223 = vadd.f32 %v209, %v46
    %v224 = vadd.f32 %v212, %v47
    %v225 = vadd.f32 %v217, %v48
    %v226 = vadd.f32 %v220, %v49
    %v227 = vmax.f32 %v223, 0.0
    %v228 = vmax.f32 %v224, 0.0
    %v229 = vmax.f32 %v225, 0.0
    %v230 = vmax.f32 %v226, 0.0
    %v231 = vld [vmem:[%s5] sm:$0xf]
    %v232 = vld [vmem:[%s5 + $0x4] sm:$0xf]
    %v233 = vld [vmem:[%s6] sm:$0xff]
    %v234 = vld [vmem:[%s6 + $0x8] sm:$0xff]
    %v235 = vld [vmem:[%s7] sm:$0xf]
    %v236 = vld [vmem:[%s7 + $0x4] sm:$0xf]
    %v237 = vld [vmem:[%s7 + $0x8] sm:$0xf]
    %v238 = vld [vmem:[%s7 + $0xc] sm:$0xf]
    %v239 = vld [vmem:[%s8] sm:$0xff]
    %v240 = vld [vmem:[%s8 + $0x8] sm:$0xff]
    %v241 = vld [vmem:[%s8 + $0x10] sm:$0xff]
    %v242 = vld [vmem:[%s8 + $0x18] sm:$0xff]
    %v243 = vpack.c.bf16 %v228, %v227
    %v244 = vpack.c.bf16 %v230, %v229
    %246 = vset.pattern.permute.xlu0 0
    %247 = vperm.xlu0 %246, %v233
    %v248 = vpop.permute.xlu0 %247
    %251 = vset.pattern.permute.xlu0 0
    %252 = vperm.xlu0 %251, %v234
    %v253 = vpop.permute.xlu0 %252
    %v257 = vunpack.c.l.b16 %v231
    %v258 = vunpack.c.l.b16 %v232
    %v259 = vpack.c.b16 %v258, %v257
    %v261 = vsel %vm89, %v259, 0
    %263 = vmatprep.subr.bf16.mxu0 0
    %264 = vmatpush1.bf16.msra.mxu0 %v243
    %265 = vmatprep.subr.bf16.mxu0 0
    %266 = vmatpush1.bf16.msra.mxu0 %v244
    %267 = vmatprep.subr.bf16.mxu0 0
    %268 = vmatpush1.bf16.msra.mxu0 0
    %269 = vmatprep.subr.bf16.mxu0 0
    %270 = vmatpush1.bf16.msra.mxu0 0
    %271 = vmatprep.subr.bf16.mxu0 0
    %272 = vmatpush1.bf16.msra.mxu0 0
    %273 = vmatprep.subr.bf16.mxu0 0
    %274 = vmatpush1.bf16.msra.mxu0 0
    %275 = vmatprep.subr.bf16.mxu0 0
    %276 = vmatpush1.bf16.msra.mxu0 0
    %277 = vmatprep.subr.bf16.mxu0 0
    %278 = vmatpush1.bf16.msra.mxu0 0
    %279 = vmatprep.subr.bf16.mxu0 0
    %280 = vmatpush1.bf16.msra.mxu0 0
    %281 = vmatprep.subr.bf16.mxu0 0
    %282 = vmatpush1.bf16.msra.mxu0 0
    %283 = vmatprep.subr.bf16.mxu0 0
    %284 = vmatpush1.bf16.msra.mxu0 0
    %285 = vmatprep.subr.bf16.mxu0 0
    %286 = vmatpush1.bf16.msra.mxu0 0
    %287 = vmatprep.subr.bf16.mxu0 0
    %288 = vmatpush1.bf16.msra.mxu0 0
    %289 = vmatprep.subr.bf16.mxu0 0
    %290 = vmatpush1.bf16.msra.mxu0 0
    %291 = vmatprep.subr.bf16.mxu0 0
    %292 = vmatpush1.bf16.msra.mxu0 0
    %293 = vmatprep.subr.bf16.mxu0 0
    %294 = vmatpush1.bf16.msra.mxu0 0
    %295 = vmatprep.mubr.bf16.mxu0 0
    %296 = vmatmul.mubr.bf16.gmra.mrb[0].mxu0 %v261
    %v297 = vpop.f32.mrb[0].mxu0
    %v298 = vadd.f32 %v248, %v297
    %v299 = vpop.f32.mrb[0].mxu0
    %v300 = vpop.f32.mrb[0].mxu0
    %v301 = vadd.f32 %v253, %v300
    %v302 = vpop.f32.mrb[0].mxu0
    %303 = vdwg.mxu0
    %v304 = vmax.f32 %v298, 0.0
    %v305 = vmax.f32 %v301, 0.0
    %v306 = vpack.c.bf16 %v305, %v304
    %308 = vset.pattern.permute.xlu0 0
    %309 = vperm.xlu0 %308, %v239
    %v310 = vpop.permute.xlu0 %309
    %313 = vset.pattern.permute.xlu0 0
    %314 = vperm.xlu0 %313, %v240
    %v315 = vpop.permute.xlu0 %314
    %318 = vset.pattern.permute.xlu0 0
    %319 = vperm.xlu0 %318, %v241
    %v320 = vpop.permute.xlu0 %319
    %323 = vset.pattern.permute.xlu0 0
    %324 = vperm.xlu0 %323, %v242
    %v325 = vpop.permute.xlu0 %324
    %v331 = vunpack.c.l.b16 %v235
    %v332 = vunpack.c.l.b16 %v236
    %v333 = vunpack.c.l.b16 %v237
    %v334 = vunpack.c.l.b16 %v238
    %v335 = vpack.c.b16 %v332, %v331
    %v336 = vpack.c.b16 %v334, %v333
    %v338 = vsel %vm167, %v335, 0
    %v341 = vsel %vm167, %v336, 0
    %343 = vmatprep.subr.bf16.mxu0 0
    %344 = vmatpush1.bf16.msra.mxu0 %v306
    %345 = vmatprep.subr.bf16.mxu0 0
    %346 = vmatpush1.bf16.msra.mxu0 0
    %347 = vmatprep.subr.bf16.mxu0 0
    %348 = vmatpush1.bf16.msra.mxu0 0
    %349 = vmatprep.subr.bf16.mxu0 0
    %350 = vmatpush1.bf16.msra.mxu0 0
    %351 = vmatprep.subr.bf16.mxu0 0
    %352 = vmatpush1.bf16.msra.mxu0 0
    %353 = vmatprep.subr.bf16.mxu0 0
    %354 = vmatpush1.bf16.msra.mxu0 0
    %355 = vmatprep.subr.bf16.mxu0 0
    %356 = vmatpush1.bf16.msra.mxu0 0
    %357 = vmatprep.subr.bf16.mxu0 0
    %358 = vmatpush1.bf16.msra.mxu0 0
    %359 = vmatprep.subr.bf16.mxu0 0
    %360 = vmatpush1.bf16.msra.mxu0 0
    %361 = vmatprep.subr.bf16.mxu0 0
    %362 = vmatpush1.bf16.msra.mxu0 0
    %363 = vmatprep.subr.bf16.mxu0 0
    %364 = vmatpush1.bf16.msra.mxu0 0
    %365 = vmatprep.subr.bf16.mxu0 0
    %366 = vmatpush1.bf16.msra.mxu0 0
    %367 = vmatprep.subr.bf16.mxu0 0
    %368 = vmatpush1.bf16.msra.mxu0 0
    %369 = vmatprep.subr.bf16.mxu0 0
    %370 = vmatpush1.bf16.msra.mxu0 0
    %371 = vmatprep.subr.bf16.mxu0 0
    %372 = vmatpush1.bf16.msra.mxu0 0
    %373 = vmatprep.subr.bf16.mxu0 0
    %374 = vmatpush1.bf16.msra.mxu0 0
    %375 = vmatprep.mubr.bf16.mxu0 0
    %376 = vmatmul.mubr.bf16.gmra.mrb[0].mxu0 %v338
    %v377 = vpop.f32.mrb[0].mxu0
    %v378 = vadd.f32 %v310, %v377
    %v379 = vpop.f32.mrb[0].mxu0
    %v380 = vpop.f32.mrb[0].mxu0
    %v381 = vadd.f32 %v315, %v380
    %v382 = vpop.f32.mrb[0].mxu0
    %383 = vmatprep.mubr.bf16.mxu0 0
    %384 = vmatmul.mubr.bf16.gmra.mrb[0].mxu0 %v341
    %v385 = vpop.f32.mrb[0].mxu0
    %v386 = vadd.f32 %v320, %v385
    %v387 = vpop.f32.mrb[0].mxu0
    %v388 = vpop.f32.mrb[0].mxu0
    %v389 = vadd.f32 %v325, %v388
    %v390 = vpop.f32.mrb[0].mxu0
    %391 = vdwg.mxu0
    %v392 = vadd.f32 %v378, %v227
    %v393 = vadd.f32 %v381, %v228
    %v394 = vadd.f32 %v386, %v229
    %v395 = vadd.f32 %v389, %v230
    %v396 = vmax.f32 %v392, 0.0
    %v397 = vmax.f32 %v393, 0.0
    %v398 = vmax.f32 %v394, 0.0
    %v399 = vmax.f32 %v395, 0.0
    %v400 = vld [vmem:[%s9] sm:$0xff]
    %v401 = vld [vmem:[%s9 + $0x8] sm:$0xff]
    %v402 = vld [vmem:[%s9 + $0x10] sm:$0xff]
    %v403 = vld [vmem:[%s9 + $0x18] sm:$0xff]
    %v404 = vld [vmem:[#allocation2] sm:$0x1]
    %406 = vset.pattern.permute.xlu0 0
    %407 = vperm.xlu0 %406, %v400
    %v408 = vpop.permute.xlu0 %407
    %411 = vset.pattern.permute.xlu0 0
    %412 = vperm.xlu0 %411, %v401
    %v413 = vpop.permute.xlu0 %412
    %416 = vset.pattern.permute.xlu0 0
    %417 = vperm.xlu0 %416, %v402
    %v418 = vpop.permute.xlu0 %417
    %421 = vset.pattern.permute.xlu0 0
    %422 = vperm.xlu0 %421, %v403
    %v423 = vpop.permute.xlu0 %422
    %v425 = vmul.f32 %v396, %v408
    %v426 = vmul.f32 %v397, %v413
    %v427 = vmul.f32 %v398, %v418
    %v428 = vmul.f32 %v399, %v423
    %v429 = vadd.f32 %v425, %v426
    %v430 = vadd.f32 %v429, %v427
    %v431 = vadd.f32 %v430, %v428
    %v432 = vrot.slane %v431, 4
    %v433 = vadd.f32 %v431, %v432
    %v434 = vrot.slane %v433, 2
    %v435 = vadd.f32 %v433, %v434
    %v436 = vrot.slane %v435, 1
    %v437 = vadd.f32 %v435, %v436
    %439 = vset.pattern.permute.xlu0 0
    %440 = vperm.xlu0 %439, %v404
    %v441 = vpop.permute.xlu0 %440
    %v443 = vlaneseq
    %v444 = vshrl.u32 %v443, 7
    %v445 = vsub.s32 0, %v444
    %v446 = vrot.slane %v441, %v445
    %v447 = vadd.f32 %v437, %v446
    %v448 = vxor.u32 %v447, 2147483648
    %v449 = vmul.f32 %v448, 1.442695
    %v450 = vpow.pop %v449
    %v451 = vadd.f32 %v450, 1.0
    %v452 = vrcp.pop %v451
    %v453 = vmul.f32 1.0, %v452
    %454 = vst [vmem:[#allocation3] sm:$0x1] %v453
    // Predicated region
    $region46: #{tpu_custom_call.1} parent=1 // pred_check
      _
    $region47: #{tpu_custom_call.1} parent=1 // pred_check_branch
      %456 = sbr.rel (0) target = $region49
    $region48: #{tpu_custom_call.1} parent=1 // pred_region
      %s458 = ssub.s32 16, 16
      %459 = vsyncadd [#allocation4], %s458
      %s461 = sshll.u32 [#allocation3], 4
      %s462 = int_to_ptr.vmem [resolvable:$true] %s461
      %464 = dma.vmem_to_hbm [thread:$0]  %s462, 16, %s11, [#allocation4]
    $region49: #{tpu_custom_call.1} parent=1 // pred_fallthru
      _
    // Predicated region
    $region50: #{tpu_custom_call.1} parent=1 // pred_check
      _
    $region51: #{tpu_custom_call.1} parent=1 // pred_check_branch
      %466 = sbr.rel (0) target = $region53
    $region52: #{tpu_custom_call.1} parent=1 // pred_region
      %467 = dma.done [#allocation4], 16
    $region53: #{tpu_custom_call.1} parent=1 // pred_fallthru
      _
    %468 = vsyncpa [#allocation4], 1

</llo_original>
